<compile_context>
chip_gen: v7x
topology: tpu7x:2x2x1
jax: 0.10.0
libtpu: 0.0.40
codegen_flags: <defaults>
</compile_context>

<pallas_src>
import functools

import jax
import jax.numpy as jnp
import numpy as np
from jax.experimental import pallas as pl
from jax.experimental.pallas import tpu as pltpu

VOCAB = 16      # input_size
HIDDEN = 32     # hidden_size
N_LAYERS = 1


def _gru_encoder_kernel(n_layers, tok_ref, emb_ref, h0_ref, w_ref, b_ref, hout_ref):
    """One EncoderRNN.forward step with a fused GRU gate matmul.

    tok_ref : SMEM (1,) int32        token id
    emb_ref : VMEM (VOCAB, H) f32    embedding table
    h0_ref  : VMEM (1, H) f32        initial hidden
    w_ref   : VMEM (2H, 4H) f32      packed gate weights [r | z | i_n | h_n]
    b_ref   : VMEM (1, 4H) f32       packed/folded gate biases
    hout_ref: VMEM (1, H) f32        new hidden (== GRU output for seq_len=1)
    """
    H = h0_ref.shape[1]

    # Bounds-guarded embedding gather (no runtime OOB check on VMEM refs).
    tok = jnp.clip(tok_ref[0], 0, emb_ref.shape[0] - 1)
    x = emb_ref[pl.ds(tok, 1), :]            # (1, H)
    h = h0_ref[...]                          # (1, H)

    # NOTE: the PyTorch module applies the SAME single-layer nn.GRU n_layers times in
    # its forward (shared weights, output fed back as input), so reusing one weight
    # set here matches the original module exactly.
    for _ in range(n_layers):                # static unroll (n_layers is tiny)
        xh = jnp.concatenate([x, h], axis=-1)                       # (1, 2H)
        gates = jnp.dot(xh, w_ref[...],
                        preferred_element_type=jnp.float32) + b_ref[...]  # (1, 4H)

        rz = jax.nn.sigmoid(gates[:, 0:2 * H])   # one sigmoid over the (1, 2H) slab
        r = rz[:, 0:H]
        z = rz[:, H:2 * H]
        i_n = gates[:, 2 * H:3 * H]
        h_n = gates[:, 3 * H:4 * H]

        n = jnp.tanh(i_n + r * h_n)
        h = (1.0 - z) * n + z * h            # PyTorch GRU update rule
        x = h                                # next application feeds output back in

    hout_ref[...] = h


def pack_gru_params(params):
    """Host-side packing of raw GRU params into one (2H,4H) weight and (1,4H) bias."""
    emb, wih, whh, bih, bhh = params
    H = emb.shape[1]
    W = jnp.zeros((2 * H, 4 * H), jnp.float32)
    W = W.at[:H, 0:H].set(wih[0]).at[H:, 0:H].set(whh[0])            # r
    W = W.at[:H, H:2 * H].set(wih[1]).at[H:, H:2 * H].set(whh[1])    # z
    W = W.at[:H, 2 * H:3 * H].set(wih[2])                            # i_n (input side)
    W = W.at[H:, 3 * H:4 * H].set(whh[2])                            # h_n (hidden side)
    b = jnp.concatenate([bih[0] + bhh[0], bih[1] + bhh[1], bih[2], bhh[2]],
                        axis=-1).astype(jnp.float32)                 # (1, 4H)
    return emb.astype(jnp.float32), W, b


def encoder_rnn_forward(token, hidden, packed_params, n_layers=N_LAYERS):
    """Pallas-backed equivalent of EncoderRNN.forward(input, hidden)."""
    emb, W, b = packed_params
    H = emb.shape[1]
    h0 = hidden.reshape(1, H).astype(jnp.float32)
    token = token.astype(jnp.int32).reshape(1)

    vmem = pl.BlockSpec(memory_space=pltpu.MemorySpace.VMEM)
    smem = pl.BlockSpec(memory_space=pltpu.MemorySpace.SMEM)

    hnew = pl.pallas_call(
        functools.partial(_gru_encoder_kernel, n_layers),
        out_shape=jax.ShapeDtypeStruct((1, H), jnp.float32),
        in_specs=[smem, vmem, vmem, vmem, vmem],
        out_specs=vmem,
    )(token, emb, h0, W, b)

    out = hnew.reshape(1, 1, H)              # output == new hidden for seq_len=1
    return out, hnew.reshape(1, 1, H)


def init_params(key, vocab=VOCAB, hidden=HIDDEN):
    """Deterministic synthetic parameters (same shapes PyTorch would create)."""
    k_emb, k_wih, k_whh, k_bih, k_bhh = jax.random.split(key, 5)
    bound = 1.0 / np.sqrt(hidden)
    emb = jax.random.normal(k_emb, (vocab, hidden), jnp.float32)            # nn.Embedding
    wih = jax.random.uniform(k_wih, (3, hidden, hidden), jnp.float32, -bound, bound)
    whh = jax.random.uniform(k_whh, (3, hidden, hidden), jnp.float32, -bound, bound)
    bih = jax.random.uniform(k_bih, (3, 1, hidden), jnp.float32, -bound, bound)
    bhh = jax.random.uniform(k_bhh, (3, 1, hidden), jnp.float32, -bound, bound)
    return emb, wih, whh, bih, bhh


def reference_forward(token, hidden, params, n_layers=N_LAYERS):
    """Pure-JAX reference matching PyTorch GRU semantics (unfused, raw params)."""
    emb, wih, whh, bih, bhh = params
    H = emb.shape[1]
    x = emb[token[0]][None, :]
    h = hidden.reshape(1, H)
    for _ in range(n_layers):
        i_r = x @ wih[0] + bih[0]
        i_z = x @ wih[1] + bih[1]
        i_n = x @ wih[2] + bih[2]
        h_r = h @ whh[0] + bhh[0]
        h_z = h @ whh[1] + bhh[1]
        h_n = h @ whh[2] + bhh[2]
        r = jax.nn.sigmoid(i_r + h_r)
        z = jax.nn.sigmoid(i_z + h_z)
        n = jnp.tanh(i_n + r * h_n)
        h = (1.0 - z) * n + z * h
        x = h
    return x.reshape(1, 1, H), h.reshape(1, 1, H)


if __name__ == "__main__":
    key = jax.random.PRNGKey(0)
    k_params, k_tok = jax.random.split(key)

    params = init_params(k_params)
    packed = pack_gru_params(params)                     # pack once, host-side
    token = jax.random.randint(k_tok, (1,), 0, VOCAB, dtype=jnp.int32)
    hidden = jnp.zeros((1, 1, HIDDEN), jnp.float32)      # EncoderRNN.initHidden()

    out, hnew = encoder_rnn_forward(token, hidden, packed)
    jax.block_until_ready((out, hnew))

    ref_out, ref_h = reference_forward(token, hidden, params)
    np.testing.assert_allclose(np.asarray(out), np.asarray(ref_out), rtol=1e-5, atol=1e-5)
    np.testing.assert_allclose(np.asarray(hnew), np.asarray(ref_h), rtol=1e-5, atol=1e-5)

    assert out.shape == (1, 1, HIDDEN) and hnew.shape == (1, 1, HIDDEN)
    print("KERNEL_OK")
</pallas_src>

<mosaic_0001>
module attributes {stable_mosaic.version = 11 : i64} {
  func.func @_gru_encoder_kernel(%arg0: memref<1xi32, #tpu.memory_space<smem>>, %arg1: memref<16x32xf32, #tpu.memory_space<vmem>>, %arg2: memref<1x32xf32, #tpu.memory_space<vmem>>, %arg3: memref<64x128xf32, #tpu.memory_space<vmem>>, %arg4: memref<1x128xf32, #tpu.memory_space<vmem>>, %arg5: memref<1x32xf32, #tpu.memory_space<vmem>>) attributes {dimension_semantics = [], scalar_prefetch = 0 : i64, scratch_operands = 0 : i64, tpu.core_type = #tpu.core_type<tc>} {
    %c0 = arith.constant 0 : index
    %0 = memref.load %arg0[%c0] : memref<1xi32, #tpu.memory_space<smem>>
    %c0_i32 = arith.constant 0 : i32
    %c15_i32 = arith.constant 15 : i32
    %1 = arith.maxsi %c0_i32, %0 : i32
    %2 = arith.minsi %c15_i32, %1 : i32
    %3 = arith.index_cast %2 : i32 to index
    %c0_0 = arith.constant 0 : index
    %4 = vector.load %arg1[%3, %c0_0] : memref<16x32xf32, #tpu.memory_space<vmem>>, vector<1x32xf32>
    %c0_1 = arith.constant 0 : index
    %c0_2 = arith.constant 0 : index
    %5 = vector.load %arg2[%c0_1, %c0_2] : memref<1x32xf32, #tpu.memory_space<vmem>>, vector<1x32xf32>
    %6 = tpu.concatenate %4, %5 in 1 : vector<1x32xf32>, vector<1x32xf32> -> vector<1x64xf32>
    %c0_3 = arith.constant 0 : index
    %c0_4 = arith.constant 0 : index
    %7 = vector.load %arg3[%c0_3, %c0_4] : memref<64x128xf32, #tpu.memory_space<vmem>>, vector<64x128xf32>
    %cst = arith.constant dense<0.000000e+00> : vector<1x128xf32>
    %8 = tpu.matmul %6, %7, %cst {dimension_numbers = #tpu.dot_dimension_numbers<[1], [0], [0], [1], [0, 0, 1, 1], [], []>} : vector<1x64xf32>, vector<64x128xf32>, vector<1x128xf32> -> vector<1x128xf32>
    %c0_5 = arith.constant 0 : index
    %c0_6 = arith.constant 0 : index
    %9 = vector.load %arg4[%c0_5, %c0_6] : memref<1x128xf32, #tpu.memory_space<vmem>>, vector<1x128xf32>
    %10 = arith.addf %8, %9 : vector<1x128xf32>
    %11 = vector.extract_strided_slice %10 {offsets = [0, 0], sizes = [1, 64], strides = [1, 1]} : vector<1x128xf32> to vector<1x64xf32>
    %12 = arith.negf %11 : vector<1x64xf32>
    %13 = math.exp %12 : vector<1x64xf32>
    %cst_7 = arith.constant 1.000000e+00 : f32
    %14 = vector.broadcast %cst_7 : f32 to vector<1x64xf32>
    %15 = arith.addf %14, %13 : vector<1x64xf32>
    %16 = arith.divf %14, %15 : vector<1x64xf32>
    %17 = vector.extract_strided_slice %16 {offsets = [0, 0], sizes = [1, 32], strides = [1, 1]} : vector<1x64xf32> to vector<1x32xf32>
    %18 = vector.extract_strided_slice %16 {offsets = [0, 32], sizes = [1, 32], strides = [1, 1]} : vector<1x64xf32> to vector<1x32xf32>
    %19 = vector.extract_strided_slice %10 {offsets = [0, 64], sizes = [1, 32], strides = [1, 1]} : vector<1x128xf32> to vector<1x32xf32>
    %20 = vector.extract_strided_slice %10 {offsets = [0, 96], sizes = [1, 32], strides = [1, 1]} : vector<1x128xf32> to vector<1x32xf32>
    %21 = arith.mulf %17, %20 : vector<1x32xf32>
    %22 = arith.addf %19, %21 : vector<1x32xf32>
    %23 = math.tanh %22 : vector<1x32xf32>
    %cst_8 = arith.constant 1.000000e+00 : f32
    %24 = vector.broadcast %cst_8 : f32 to vector<1x32xf32>
    %25 = arith.subf %24, %18 : vector<1x32xf32>
    %26 = arith.mulf %25, %23 : vector<1x32xf32>
    %27 = arith.mulf %18, %5 : vector<1x32xf32>
    %28 = arith.addf %26, %27 : vector<1x32xf32>
    %c0_9 = arith.constant 0 : index
    %c0_10 = arith.constant 0 : index
    %29 = vector.load %arg5[%c0_9, %c0_10] : memref<1x32xf32, #tpu.memory_space<vmem>>, vector<1x32xf32>
    tpu.vector_store %arg5[%c0_9, %c0_10], %28 {strides = array<i32>} : memref<1x32xf32, #tpu.memory_space<vmem>>, vector<1x32xf32>,
    return
  }
}

</mosaic_0001>

<llo_original>
// kernel: tpu_custom_call.1
$region0: #{tpu_custom_call.1}
  #allocation0 [shape = 'u32[]', space=smem, size = 0x4, offset = 0x4, fixed_abs, tag = 'smem constant byte address 0x4 - core index']
  #allocation1 [shape = 'u32[144,128]{1,0:T(1,128)}', space=vmem, size = 0x12000, scoped, tag = 'internal scratch']
  #allocation2 [shape = 's32[1]{0:T(128)S(6)}', space=smem, size = 0x200, scoped, tag = 'scoped memory for tpu_custom_call.1']
  %s0 = inlined_call_operand.<no memory space> [shape: s32[1], index: 0, kind: input, shape index: {}]
  %s1 = inlined_call_operand.hbm [shape: f32[16,32], index: 1, kind: input, shape index: {}]
  %s2 = inlined_call_operand.vmem [shape: f32[1,32], index: 2, kind: input, shape index: {}]
  %s3 = inlined_call_operand.hbm [shape: f32[64,128], index: 3, kind: input, shape index: {}]
  %s4 = inlined_call_operand.vmem [shape: f32[1,128], index: 4, kind: input, shape index: {}]
  %s5 = inlined_call_operand.hbm [shape: f32[1,32], index: 5, kind: output, shape index: {}]
  %s6 = sld [smem:[#allocation0]]
  $region38: #{tpu_custom_call.1} parent=0
    _
  %s8 = ssub.s32 1, %s6
  %s9 = scalar_select 0, %s8, %s6
  %10 = sst [smem:[#allocation2]] %s0
  $region1: #{tpu_custom_call.1} parent=0
    #allocation3 [shape = 'u8[8192]{0}', space=vmem, size = 0x2000, scoped, tag = 'input window, operand 1, single buffered']
    #allocation4 [shape = 's32[1]{0}', space=sflag, size = 0x4, scoped, tag = 'scoped memory for tpu_custom_call.1']
    #allocation5 [shape = 's32[1]{0}', space=sflag, size = 0x4, scoped, tag = 'scoped memory for tpu_custom_call.1']
    #allocation6 [shape = 'u8[32768]{0}', space=vmem, size = 0x8000, scoped, tag = 'input window, operand 3, single buffered']
    #allocation7 [shape = 's32[1]{0}', space=sflag, size = 0x4, scoped, tag = 'scoped memory for tpu_custom_call.1']
    #allocation8 [shape = 'u8[512]{0}', space=vmem, size = 0x400, scoped, tag = 'output window, operand 0, single buffered']
    %11 = vsyncpa [#allocation4], 0
    %12 = vsyncpa [#allocation7], 0
    %13 = vsyncpa [#allocation5], 0
    // Predicated region
    $region2: #{tpu_custom_call.1} parent=1 // pred_check
      _
    $region3: #{tpu_custom_call.1} parent=1 // pred_check_branch
      %15 = sbr.rel (0) target = $region5
    $region4: #{tpu_custom_call.1} parent=1 // pred_region
      _
    $region5: #{tpu_custom_call.1} parent=1 // pred_fallthru
      _
    // Predicated region
    $region6: #{tpu_custom_call.1} parent=1 // pred_check
      _
    $region7: #{tpu_custom_call.1} parent=1 // pred_check_branch
      %17 = sbr.rel (0) target = $region9
    $region8: #{tpu_custom_call.1} parent=1 // pred_region
      %s19 = ssub.s32 256, 256
      %20 = vsyncadd [#allocation4], %s19
      %s21 = sshll.u32 [#allocation3], 4
      %s22 = int_to_ptr.vmem [resolvable:$true] %s21
      %27 = dma.hbm_to_vmem [thread:$0]  %s1, 256, %s22, [#allocation4], 128, 128, 8
    $region9: #{tpu_custom_call.1} parent=1 // pred_fallthru
      _
    // Predicated region
    $region10: #{tpu_custom_call.1} parent=1 // pred_check
      _
    $region11: #{tpu_custom_call.1} parent=1 // pred_check_branch
      %29 = sbr.rel (0) target = $region13
    $region12: #{tpu_custom_call.1} parent=1 // pred_region
      _
    $region13: #{tpu_custom_call.1} parent=1 // pred_fallthru
      _
    // Predicated region
    $region14: #{tpu_custom_call.1} parent=1 // pred_check
      _
    $region15: #{tpu_custom_call.1} parent=1 // pred_check_branch
      %31 = sbr.rel (0) target = $region17
    $region16: #{tpu_custom_call.1} parent=1 // pred_region
      %s33 = ssub.s32 1024, 1024
      %34 = vsyncadd [#allocation7], %s33
      %s35 = sshll.u32 [#allocation6], 4
      %s36 = int_to_ptr.vmem [resolvable:$true] %s35
      %41 = dma.hbm_to_vmem [thread:$0]  %s3, 1024, %s36, [#allocation7], 128, 128, 8
    $region17: #{tpu_custom_call.1} parent=1 // pred_fallthru
      _
    // Predicated region
    $region18: #{tpu_custom_call.1} parent=1 // pred_check
      _
    $region19: #{tpu_custom_call.1} parent=1 // pred_check_branch
      %43 = sbr.rel (0) target = $region21
    $region20: #{tpu_custom_call.1} parent=1 // pred_region
      _
    $region21: #{tpu_custom_call.1} parent=1 // pred_fallthru
      _
    // Predicated region
    $region22: #{tpu_custom_call.1} parent=1 // pred_check
      _
    $region23: #{tpu_custom_call.1} parent=1 // pred_check_branch
      %45 = sbr.rel (0) target = $region25
    $region24: #{tpu_custom_call.1} parent=1 // pred_region
      %46 = dma.done [#allocation4], 256
    $region25: #{tpu_custom_call.1} parent=1 // pred_fallthru
      _
    // Predicated region
    $region26: #{tpu_custom_call.1} parent=1 // pred_check
      _
    $region27: #{tpu_custom_call.1} parent=1 // pred_check_branch
      %48 = sbr.rel (0) target = $region29
    $region28: #{tpu_custom_call.1} parent=1 // pred_region
      %49 = dma.done [#allocation7], 1024
    $region29: #{tpu_custom_call.1} parent=1 // pred_fallthru
      _
    %s50 = sld [smem:[#allocation2]]
    %p51 = scmp.gt.s32.totalorder %s50, 0
    %s52 = scalar_select %p51, %s50, 0
    %p53 = scmp.lt.s32.totalorder %s52, 15
    %s54 = scalar_select %p53, %s52, 15
    %s55 = scalar_lea.vmem [#allocation3], %s54
    %v56 = vld [vmem:[%s55] sm:$0x1]
    %v57 = vld [vmem:[%s2] sm:$0x1]
    %v59 = vlaneseq
    %v60 = vshrl.u32 %v59, 7
    %v61 = vsub.s32 0, %v60
    %v62 = vrot.slane %v57, %v61
    %63 = vrot.lane.b32.xlu0 %v62, 32
    %v64 = vpop.permute.xlu0 %63
    %vm66 = vcmask 261120
    %v67 = vsel %vm66, %v56, %v64
    %v68 = vld [vmem:[#allocation6] sm:$0xff]
    %v69 = vld [vmem:[#allocation6 + $0x8] sm:$0xff]
    %v70 = vld [vmem:[#allocation6 + $0x10] sm:$0xff]
    %v71 = vld [vmem:[#allocation6 + $0x18] sm:$0xff]
    %v72 = vld [vmem:[#allocation6 + $0x20] sm:$0xff]
    %v73 = vld [vmem:[#allocation6 + $0x28] sm:$0xff]
    %v74 = vld [vmem:[#allocation6 + $0x30] sm:$0xff]
    %v75 = vld [vmem:[#allocation6 + $0x38] sm:$0xff]
    %v76 = vld [vmem:[%s4] sm:$0x1]
    %vm77 = vcmask 523264
    %v79 = vsel %vm77, %v67, 0
    %81 = vmatprep.subr.mxu0 0.0
    %82 = vmatpush1.msra.mxu0 %v68
    %83 = vmatprep.subr.mxu0 0.0
    %84 = vmatpush1.msra.mxu0 %v69
    %85 = vmatprep.subr.mxu0 0.0
    %86 = vmatpush1.msra.mxu0 %v70
    %87 = vmatprep.subr.mxu0 0.0
    %88 = vmatpush1.msra.mxu0 %v71
    %89 = vmatprep.subr.mxu0 0.0
    %90 = vmatpush1.msra.mxu0 %v72
    %91 = vmatprep.subr.mxu0 0.0
    %92 = vmatpush1.msra.mxu0 %v73
    %93 = vmatprep.subr.mxu0 0.0
    %94 = vmatpush1.msra.mxu0 %v74
    %95 = vmatprep.subr.mxu0 0.0
    %96 = vmatpush1.msra.mxu0 %v75
    %97 = vmatprep.subr.mxu0 0.0
    %98 = vmatpush1.msra.mxu0 0.0
    %99 = vmatprep.subr.mxu0 0.0
    %100 = vmatpush1.msra.mxu0 0.0
    %101 = vmatprep.subr.mxu0 0.0
    %102 = vmatpush1.msra.mxu0 0.0
    %103 = vmatprep.subr.mxu0 0.0
    %104 = vmatpush1.msra.mxu0 0.0
    %105 = vmatprep.subr.mxu0 0.0
    %106 = vmatpush1.msra.mxu0 0.0
    %107 = vmatprep.subr.mxu0 0.0
    %108 = vmatpush1.msra.mxu0 0.0
    %109 = vmatprep.subr.mxu0 0.0
    %110 = vmatpush1.msra.mxu0 0.0
    %111 = vmatprep.subr.mxu0 0.0
    %112 = vmatpush1.msra.mxu0 0.0
    %113 = vmatprep.subr.mxu0 0.0
    %114 = vmatpush1.msra.mxu0 0.0
    %115 = vmatprep.subr.mxu0 0.0
    %116 = vmatpush1.msra.mxu0 0.0
    %117 = vmatprep.subr.mxu0 0.0
    %118 = vmatpush1.msra.mxu0 0.0
    %119 = vmatprep.subr.mxu0 0.0
    %120 = vmatpush1.msra.mxu0 0.0
    %121 = vmatprep.subr.mxu0 0.0
    %122 = vmatpush1.msra.mxu0 0.0
    %123 = vmatprep.subr.mxu0 0.0
    %124 = vmatpush1.msra.mxu0 0.0
    %125 = vmatprep.subr.mxu0 0.0
    %126 = vmatpush1.msra.mxu0 0.0
    %127 = vmatprep.subr.mxu0 0.0
    %128 = vmatpush1.msra.mxu0 0.0
    %129 = vmatprep.subr.mxu0 0.0
    %130 = vmatpush1.msra.mxu0 0.0
    %131 = vmatprep.subr.mxu0 0.0
    %132 = vmatpush1.msra.mxu0 0.0
    %133 = vmatprep.subr.mxu0 0.0
    %134 = vmatpush1.msra.mxu0 0.0
    %135 = vmatprep.subr.mxu0 0.0
    %136 = vmatpush1.msra.mxu0 0.0
    %137 = vmatprep.subr.mxu0 0.0
    %138 = vmatpush1.msra.mxu0 0.0
    %139 = vmatprep.subr.mxu0 0.0
    %140 = vmatpush1.msra.mxu0 0.0
    %141 = vmatprep.subr.mxu0 0.0
    %142 = vmatpush1.msra.mxu0 0.0
    %143 = vmatprep.subr.mxu0 0.0
    %144 = vmatpush1.msra.mxu0 0.0
    %145 = vmatprep.mubr.f32.mxu0 0.0
    %146 = vmatmul.mubr.f32.gmra.mrb[0].mxu0 %v79
    %v147 = vpop.f32.mrb[0].mxu0
    %v148 = vadd.f32 %v76, %v147
    %v149 = vpop.f32.mrb[0].mxu0
    %150 = vdwg.mxu0
    %v151 = vxor.u32 %v148, 2147483648
    %v152 = vmul.f32 %v151, 1.442695
    %v153 = vpow.pop %v152
    %v154 = vadd.f32 %v153, 1.0
    %v155 = vrcp.pop %v154
    %v156 = vmul.f32 1.0, %v155
    %158 = vrot.lane.b32.xlu0 %v148, 32
    %v159 = vpop.permute.xlu0 %158
    %v161 = vmul.f32 %v156, %v159
    %163 = vrot.lane.b32.xlu0 %v161, 64
    %v164 = vpop.permute.xlu0 %163
    %v166 = vadd.f32 %v148, %v164
    %v167 = vtanh.pop %v166
    %v168 = vsub.f32 1.0, %v156
    %170 = vrot.lane.b32.xlu0 %v167, 96
    %v171 = vpop.permute.xlu0 %170
    %v173 = vmul.f32 %v168, %v171
    %v174 = vmul.f32 %v156, %v64
    %v175 = vadd.f32 %v173, %v174
    %177 = vrot.lane.b32.xlu0 %v175, 96
    %v178 = vpop.permute.xlu0 %177
    %vm180 = vcmask 253952
    %181 = vst.msk [vmem:[#allocation8] sm:$0x1] %vm180, %v178
    // Predicated region
    $region30: #{tpu_custom_call.1} parent=1 // pred_check
      _
    $region31: #{tpu_custom_call.1} parent=1 // pred_check_branch
      %183 = sbr.rel (0) target = $region33
    $region32: #{tpu_custom_call.1} parent=1 // pred_region
      %s185 = ssub.s32 16, 16
      %186 = vsyncadd [#allocation5], %s185
      %s188 = sshll.u32 [#allocation8], 4
      %s189 = int_to_ptr.vmem [resolvable:$true] %s188
      %191 = dma.vmem_to_hbm [thread:$0]  %s189, 16, %s5, [#allocation5]
    $region33: #{tpu_custom_call.1} parent=1 // pred_fallthru
      _
    // Predicated region
    $region34: #{tpu_custom_call.1} parent=1 // pred_check
      _
    $region35: #{tpu_custom_call.1} parent=1 // pred_check_branch
      %193 = sbr.rel (0) target = $region37
    $region36: #{tpu_custom_call.1} parent=1 // pred_region
      %194 = dma.done [#allocation5], 16
    $region37: #{tpu_custom_call.1} parent=1 // pred_fallthru
      _
    %195 = vsyncpa [#allocation4], 1
    %196 = vsyncpa [#allocation7], 1
    %197 = vsyncpa [#allocation5], 1

</llo_original>
